<compile_context>
chip_gen: v7x
topology: tpu7x:2x2x1
jax: 0.10.0
libtpu: 0.0.40
codegen_flags: <defaults>
</compile_context>

<pallas_src>
import functools

import jax
import jax.numpy as jnp
from jax.experimental import pallas as pl
from jax.experimental.pallas import tpu as pltpu


def _mixture_kernel(scal_ref, h_ref, w_ref, o_ref):
    """One grid step computes a (B_pad, block_v) tile of the vocab dimension.

    scal_ref : SMEM (2,) f32 — [beta, q_head_bias].
    h_ref    : (B_pad, H) last-position hidden states (resident every step).
    w_ref    : (2, H, block_v) stacked [lm_head.T, q_head.T] weight tile.
    o_ref    : (B_pad, block_v) f32 mixture output tile.
    """
    beta = scal_ref[0]
    q_bias = scal_ref[1]
    h = h_ref[...]
    # Native (M,K)@(K,N) operands feed the MXU directly; accumulate in f32.
    lm = jnp.dot(h, w_ref[0], preferred_element_type=jnp.float32)
    q = jnp.dot(h, w_ref[1], preferred_element_type=jnp.float32)
    # mixture = lm + beta * (q + q_head_bias); beta applied to the f32
    # accumulator (cheap filler in a memory-bound kernel, best numerics).
    o_ref[...] = (lm + beta * (q + q_bias)).astype(o_ref.dtype)


def _tpu_caps():
    """(physical VMEM bytes per core, TensorCores per chip) with safe fallbacks."""
    vmem_cap = 64 << 20   # conservative default (v7x-sized)
    num_cores = 1
    try:
        info = pltpu.get_tpu_info()
        vmem_cap = int(getattr(info, "vmem_capacity_bytes", vmem_cap))
        num_cores = int(getattr(info, "num_cores",
                                getattr(info, "tensorcores_per_chip", num_cores)))
    except Exception:
        pass
    return vmem_cap, max(num_cores, 1)


def prepare_ilql_heads(w_lm, w_q, *, max_block_v=None):
    """Call-invariant weight prep (do ONCE, outside the per-token forward).

    nn.Linear stores weights as (V, H); transpose to the MXU-native (K, N) =
    (H, V) layout, stack lm_head / q_head along a leading axis so both heads
    stream as a single HBM DMA stream, and zero-pad the vocab dimension to a
    tile multiple (handles GPT-2-style non-divisible vocab sizes).

    Returns (w_stack of shape (2, H, V_pad), block_v).
    """
    V, H = w_lm.shape
    assert w_q.shape == (V, H)
    w_isz = jnp.dtype(w_lm.dtype).itemsize
    vmem_cap, num_cores = _tpu_caps()

    # Generation-aware budget for the double-buffered fused weight stream:
    #   v5e/v6e (128 MiB VMEM) -> up to 64 MiB; v7x (64 MiB/TC) -> <= 28 MiB.
    weight_budget = (64 << 20) if vmem_cap >= (96 << 20) else (28 << 20)

    candidates = [4096, 2048, 1024, 512, 256, 128]
    if max_block_v is not None:
        candidates = [c for c in candidates if c <= max_block_v] or [128]
    block_v = 128
    for c in candidates:
        if 2 * (2 * H) * c * w_isz <= weight_budget:   # leading 2x: double buffering
            block_v = c
            break
    # Keep the ("parallel",) vocab grid splittable across TensorCores (v7x: 2 TCs).
    while block_v > 128 and -(-V // block_v) < 2 * num_cores:
        block_v //= 2
    v_pad = -(-V // block_v) * block_v
    if num_cores > 1 and (v_pad // block_v) % num_cores != 0:
        v_pad += block_v   # one extra all-zero tile keeps every core busy each step

    w_stack = jnp.stack([w_lm.T, w_q.T], axis=0)       # (2, H, V)
    if v_pad != V:
        w_stack = jnp.pad(w_stack, ((0, 0), (0, 0), (0, v_pad - V)))
    return w_stack, block_v


@functools.partial(jax.jit, static_argnames=("block_v", "vocab_size"))
def ilql_forward_mixture(hidden, w_stack, beta, q_head_bias, *, block_v, vocab_size):
    """hidden: (B, S, H); w_stack: (2, H, V_pad) from prepare_ilql_heads;
    beta, q_head_bias: scalars.

    Returns mixture logits of shape (B, 1, vocab_size) matching
    ILQLModel.forward's `lm_logits + beta * q_values` at the last position.
    """
    B, S, H = hidden.shape
    two, H2, V_pad = w_stack.shape
    assert two == 2 and H2 == H
    assert V_pad % block_v == 0 and vocab_size <= V_pad

    h_last = hidden[:, -1, :]                         # glue: "[:, -1:, :]"

    # Pad batch to the dtype-native sublane multiple (bf16 -> 16 rows) so the
    # MXU LHS is a full native tile and output stores are unmasked.
    packing = max(1, 4 // jnp.dtype(h_last.dtype).itemsize)
    row_mult = 8 * packing
    B_pad = -(-B // row_mult) * row_mult
    if B_pad != B:
        h_last = jnp.pad(h_last, ((0, B_pad - B), (0, 0)))

    scalars = jnp.stack([jnp.asarray(beta, jnp.float32),
                         jnp.asarray(q_head_bias, jnp.float32)])

    grid = (V_pad // block_v,)

    w_isz = jnp.dtype(w_stack.dtype).itemsize
    h_isz = jnp.dtype(h_last.dtype).itemsize

    vmem_cap, _ = _tpu_caps()
    limit_cap = (96 << 20) if vmem_cap >= (96 << 20) else (52 << 20)
    need = (2 * 2 * H * block_v * w_isz        # double-buffered fused weight stream
            + 2 * B_pad * H * h_isz            # resident hidden slab (conservative x2)
            + 2 * B_pad * block_v * 4)         # double-buffered f32 output tile
    vmem_limit = int(min(max(need + (8 << 20), 32 << 20), limit_cap))

    cost = pl.CostEstimate(
        flops=2 * B_pad * (2 * H) * V_pad,
        transcendentals=0,
        bytes_accessed=2 * H * V_pad * w_isz + B_pad * H * h_isz + B_pad * V_pad * 4,
    )

    out = pl.pallas_call(
        _mixture_kernel,
        out_shape=jax.ShapeDtypeStruct((B_pad, V_pad), jnp.float32),
        grid_spec=pltpu.PrefetchScalarGridSpec(
            num_scalar_prefetch=0,
            grid=grid,
            in_specs=[
                pl.BlockSpec(memory_space=pltpu.MemorySpace.SMEM),    # [beta, q_bias]
                pl.BlockSpec((B_pad, H), lambda j: (0, 0)),            # hidden (resident)
                pl.BlockSpec((2, H, block_v), lambda j: (0, 0, j)),    # fused weight tile
            ],
            out_specs=pl.BlockSpec((B_pad, block_v), lambda j: (0, j)),
        ),
        compiler_params=pltpu.CompilerParams(
            dimension_semantics=("parallel",),   # v7x: vocab grid shards over 2 TCs
            vmem_limit_bytes=vmem_limit,
        ),
        cost_estimate=cost,
    )(scalars, h_last, w_stack)

    return out[:B, :vocab_size].reshape(B, 1, vocab_size)


if __name__ == "__main__":
    # Small, module-consistent shapes; V is deliberately NOT a multiple of 128
    # to exercise the vocab-padding path (real heads: GPT-2 V=50257).
    B, S, H, V = 2, 8, 128, 1000

    key = jax.random.PRNGKey(0)
    k_h, k_w, k_dw = jax.random.split(key, 3)

    # Synthetic "last hidden states" of the backbone LM (heads run in bf16).
    hidden = jax.random.normal(k_h, (B, S, H), dtype=jnp.float32).astype(jnp.bfloat16)

    # lm_head weight; q_head is a clone of it (see _clone_existing_lm_head),
    # perturbed slightly to emulate post-init training divergence.
    w_lm = (0.02 * jax.random.normal(k_w, (V, H), dtype=jnp.float32)).astype(jnp.bfloat16)
    w_q = (w_lm.astype(jnp.float32)
           + 0.001 * jax.random.normal(k_dw, (V, H), dtype=jnp.float32)).astype(jnp.bfloat16)

    beta = 0.5
    q_head_bias = 0.1   # deterministic stand-in for -logits.mean()

    # One-time, call-invariant weight prep (transpose + fuse + vocab pad).
    # max_block_v keeps the demo grid multi-step despite the tiny vocab.
    w_stack, block_v = prepare_ilql_heads(w_lm, w_q, max_block_v=256)
    w_stack = jax.block_until_ready(w_stack)

    mixture = ilql_forward_mixture(hidden, w_stack, beta, q_head_bias,
                                   block_v=block_v, vocab_size=V)
    mixture = jax.block_until_ready(mixture)

    # Pure-JAX reference for sanity.
    h_last = hidden[:, -1, :].astype(jnp.float32)
    lm_ref = h_last @ w_lm.astype(jnp.float32).T
    q_ref = h_last @ w_q.astype(jnp.float32).T + q_head_bias
    ref = (lm_ref + beta * q_ref).reshape(B, 1, V)

    assert mixture.shape == (B, 1, V)
    assert jnp.allclose(mixture, ref, atol=2e-2, rtol=2e-2), \
        float(jnp.max(jnp.abs(mixture - ref)))

    print("KERNEL_OK")
</pallas_src>

<mosaic_0001>
module attributes {stable_mosaic.version = 11 : i64} {
  func.func @_mixture_kernel(%arg0: i32, %arg1: memref<2xf32, #tpu.memory_space<smem>>, %arg2: memref<16x128xbf16, #tpu.memory_space<vmem>>, %arg3: memref<2x128x256xbf16, #tpu.memory_space<vmem>>, %arg4: memref<16x256xf32, #tpu.memory_space<vmem>>) attributes {dimension_semantics = [#tpu.dimension_semantics<parallel>], iteration_bounds = array<i64: 4>, scalar_prefetch = 0 : i64, scratch_operands = 0 : i64, tpu.core_type = #tpu.core_type<tc>, window_params = [{transform_indices = @transform_0, window_bounds = array<i64: 2>}, {pipeline_mode = #tpu.pipeline_mode<synchronous>, transform_indices = @transform_1, window_bounds = array<i64: 16, 128>}, {transform_indices = @transform_2, window_bounds = array<i64: 2, 128, 256>}, {transform_indices = @transform_3, window_bounds = array<i64: 16, 256>}]} {
    %c0 = arith.constant 0 : index
    %0 = memref.load %arg1[%c0] : memref<2xf32, #tpu.memory_space<smem>>
    %c1 = arith.constant 1 : index
    %1 = memref.load %arg1[%c1] : memref<2xf32, #tpu.memory_space<smem>>
    %c0_0 = arith.constant 0 : index
    %c0_1 = arith.constant 0 : index
    %2 = vector.load %arg2[%c0_0, %c0_1] : memref<16x128xbf16, #tpu.memory_space<vmem>>, vector<16x128xbf16>
    %c0_2 = arith.constant 0 : index
    %c0_3 = arith.constant 0 : index
    %c0_4 = arith.constant 0 : index
    %3 = vector.load %arg3[%c0_2, %c0_3, %c0_4] : memref<2x128x256xbf16, #tpu.memory_space<vmem>>, vector<1x128x256xbf16>
    %4 = vector.shape_cast %3 : vector<1x128x256xbf16> to vector<128x256xbf16>
    %cst = arith.constant dense<0.000000e+00> : vector<16x256xf32>
    %5 = tpu.matmul %2, %4, %cst {dimension_numbers = #tpu.dot_dimension_numbers<[1], [0], [0], [1], [0, 0, 1, 1], [], []>} : vector<16x128xbf16>, vector<128x256xbf16>, vector<16x256xf32> -> vector<16x256xf32>
    %c1_5 = arith.constant 1 : index
    %c0_6 = arith.constant 0 : index
    %c0_7 = arith.constant 0 : index
    %6 = vector.load %arg3[%c1_5, %c0_6, %c0_7] : memref<2x128x256xbf16, #tpu.memory_space<vmem>>, vector<1x128x256xbf16>
    %7 = vector.shape_cast %6 : vector<1x128x256xbf16> to vector<128x256xbf16>
    %cst_8 = arith.constant dense<0.000000e+00> : vector<16x256xf32>
    %8 = tpu.matmul %2, %7, %cst_8 {dimension_numbers = #tpu.dot_dimension_numbers<[1], [0], [0], [1], [0, 0, 1, 1], [], []>} : vector<16x128xbf16>, vector<128x256xbf16>, vector<16x256xf32> -> vector<16x256xf32>
    %9 = vector.broadcast %1 : f32 to vector<16x256xf32>
    %10 = arith.addf %8, %9 : vector<16x256xf32>
    %11 = vector.broadcast %0 : f32 to vector<16x256xf32>
    %12 = arith.mulf %11, %10 : vector<16x256xf32>
    %13 = arith.addf %5, %12 : vector<16x256xf32>
    %c0_9 = arith.constant 0 : index
    %c0_10 = arith.constant 0 : index
    %14 = vector.load %arg4[%c0_9, %c0_10] : memref<16x256xf32, #tpu.memory_space<vmem>>, vector<16x256xf32>
    tpu.vector_store %arg4[%c0_9, %c0_10], %13 {strides = array<i32>} : memref<16x256xf32, #tpu.memory_space<vmem>>, vector<16x256xf32>,
    return
  }
  func.func @transform_0(%arg0: i32) -> i32 {
    %c0_i32 = arith.constant 0 : i32
    %c0_i32_0 = arith.constant 0 : i32
    return %c0_i32 : i32
  }
  func.func @transform_1(%arg0: i32) -> (i32, i32) {
    %c0_i32 = arith.constant 0 : i32
    %c0_i32_0 = arith.constant 0 : i32
    %c0_i32_1 = arith.constant 0 : i32
    return %c0_i32, %c0_i32_0 : i32, i32
  }
  func.func @transform_2(%arg0: i32) -> (i32, i32, i32) {
    %c0_i32 = arith.constant 0 : i32
    %c0_i32_0 = arith.constant 0 : i32
    %c0_i32_1 = arith.constant 0 : i32
    return %c0_i32, %c0_i32_0, %arg0 : i32, i32, i32
  }
  func.func @transform_3(%arg0: i32) -> (i32, i32) {
    %c0_i32 = arith.constant 0 : i32
    %c0_i32_0 = arith.constant 0 : i32
    return %c0_i32, %arg0 : i32, i32
  }
}

</mosaic_0001>

<llo_original>
// kernel: ilql_forward_mixture.1
$region0: #{ilql_forward_mixture.1}
  #allocation0 [shape = 'u32[]', space=smem, size = 0x4, offset = 0x4, fixed_abs, tag = 'smem constant byte address 0x4 - core index']
  #allocation1 [shape = 'u32[144,128]{1,0:T(1,128)}', space=vmem, size = 0x12000, scoped, tag = 'internal scratch']
  %s0 = inlined_call_operand.vmem [shape: f32[2], index: 0, kind: input, shape index: {}]
  %s1 = inlined_call_operand.vmem [shape: bf16[16,128], index: 1, kind: input, shape index: {}]
  %s2 = inlined_call_operand.hbm [shape: bf16[2,128,1024], index: 2, kind: input, shape index: {}]
  %s3 = inlined_call_operand.vmem [shape: f32[16,1024], index: 3, kind: output, shape index: {}]
  %s4 = sld [smem:[#allocation0]]
  $region72: #{ilql_forward_mixture.1} parent=0
    _
  %s6 = ssub.s32 1, %s4
  %s7 = scalar_select 0, %s6, %s4
  $region1: #{ilql_forward_mixture.1} parent=0
    #allocation2 [shape = 'u8[512]{0}', space=smem, size = 0x200, scoped, tag = 'input window, operand 0, single buffered']
    #allocation3 [shape = 's32[2]{0}', space=sflag, size = 0x8, scoped, tag = 'scoped memory for ilql_forward_mixture.1']
    #allocation4 [shape = 's32[2]{0}', space=sflag, size = 0x8, scoped, tag = 'scoped memory for ilql_forward_mixture.1']
    #allocation5 [shape = 'u8[262144]{0}', space=vmem, size = 0x40000, scoped, tag = 'input window, operand 2']
    #allocation6 [shape = 'u8[32768]{0}', space=vmem, size = 0x8000, scoped, tag = 'output window, operand 0']
    %8 = vsyncpa [#allocation4], 0
    %9 = vsyncpa [#allocation3], 0
    %s10 = scalar_lea.sflag [#allocation3], 1
    %11 = vsyncpa %s10, 0
    loop: start=0, step=1, limit=6
    $region2: #{ilql_forward_mixture.1} parent=1 // loop_pre_header
      _
    $region3: #{ilql_forward_mixture.1} parent=1 // loop_header
      %s13 = sphi 0, %s17
      %p14 = scmp.ge.s32.totalorder %s13, 6
      %s21 = sphi 0, %s21
      %s23 = sphi 0, %s21
      %s24 = sphi 0, %s23
      %s38 = sphi 0, %s24
      %s42 = sphi 0, %s42
      %s44 = sphi 0, %s42
      %s45 = sphi 0, %s44
      %s59 = sphi 0, %s45
      %s65 = sphi 0, %s67
      %s68 = sphi 0, %s65
      %s69 = sphi 0, %s68
      %s85 = sphi 0, %s69
      %s91 = sphi 0, %s93
      %s94 = sphi 0, %s91
      %s95 = sphi 0, %s94
      %s111 = sphi 0, %s95
    $region4: #{ilql_forward_mixture.1} parent=1 // loop_header_branch
      %16 = sbr.rel (%p14) target = $region8
    $region5: #{ilql_forward_mixture.1} parent=1 // loop_body
      %s18 = ssub.s32 %s13, 1
      %s19 = ssub.s32 %s13, 2
      %s20 = sadd.s32 %s13, 1
      %s22 = sadd.s32 %s21, 1
      %p25 = scmp.eq.s32.totalorder %s13, 3
      %p26 = scmp.ne.s32.totalorder %s21, %s23
      %p27 = scmp.eq.s32.totalorder %s13, 0
      %p28 = por %p26, %p27
      %p29 = scmp.ne.s32.totalorder %s21, %s23
      %p30 = scmp.eq.s32.totalorder %s18, 3
      %p31 = por %p29, %p30
      %p32 = scmp.ne.s32.totalorder %s23, %s24
      %p33 = scmp.eq.s32.totalorder %s18, 0
      %p34 = por %p32, %p33
      %p35 = scmp.ne.s32.totalorder %s23, %s24
      %p36 = scmp.eq.s32.totalorder %s19, 3
      %p37 = por %p35, %p36
      %p39 = scmp.ne.s32.totalorder %s24, %s38
      %p40 = scmp.eq.s32.totalorder %s19, 0
      %p41 = por %p39, %p40
      %s43 = sadd.s32 %s42, 1
      %p46 = scmp.eq.s32.totalorder %s13, 3
      %p47 = scmp.ne.s32.totalorder %s42, %s44
      %p48 = scmp.eq.s32.totalorder %s13, 0
      %p49 = por %p47, %p48
      %p50 = scmp.ne.s32.totalorder %s42, %s44
      %p51 = scmp.eq.s32.totalorder %s18, 3
      %p52 = por %p50, %p51
      %p53 = scmp.ne.s32.totalorder %s44, %s45
      %p54 = scmp.eq.s32.totalorder %s18, 0
      %p55 = por %p53, %p54
      %p56 = scmp.ne.s32.totalorder %s44, %s45
      %p57 = scmp.eq.s32.totalorder %s19, 3
      %p58 = por %p56, %p57
      %p60 = scmp.ne.s32.totalorder %s45, %s59
      %p61 = scmp.eq.s32.totalorder %s19, 0
      %p62 = por %p60, %p61
      %s63 = ssub.s32 %s13, %s20
      %p64 = scmp.eq.s32.totalorder %s63, 0
      %s66 = sadd.s32 %s65, 1
      %s67 = scalar_select %p64, %s65, %s66
      %p70 = pneg %p64
      %p71 = scmp.eq.s32.totalorder %s13, 3
      %p72 = por %p70, %p71
      %p73 = scmp.ne.s32.totalorder %s65, %s68
      %p74 = scmp.eq.s32.totalorder %s13, 0
      %p75 = por %p73, %p74
      %p76 = scmp.ne.s32.totalorder %s65, %s68
      %p77 = scmp.eq.s32.totalorder %s18, 3
      %p78 = por %p76, %p77
      %p79 = scmp.ne.s32.totalorder %s68, %s69
      %p80 = scmp.eq.s32.totalorder %s18, 0
      %p81 = por %p79, %p80
      %p82 = scmp.ne.s32.totalorder %s68, %s69
      %p83 = scmp.eq.s32.totalorder %s19, 3
      %p84 = por %p82, %p83
      %p86 = scmp.ne.s32.totalorder %s69, %s85
      %p87 = scmp.eq.s32.totalorder %s19, 0
      %p88 = por %p86, %p87
      %s89 = ssub.s32 %s13, %s20
      %p90 = scmp.eq.s32.totalorder %s89, 0
      %s92 = sadd.s32 %s91, 1
      %s93 = scalar_select %p90, %s91, %s92
      %p96 = pneg %p90
      %p97 = scmp.eq.s32.totalorder %s13, 3
      %p98 = por %p96, %p97
      %p99 = scmp.ne.s32.totalorder %s91, %s94
      %p100 = scmp.eq.s32.totalorder %s13, 0
      %p101 = por %p99, %p100
      %p102 = scmp.ne.s32.totalorder %s91, %s94
      %p103 = scmp.eq.s32.totalorder %s18, 3
      %p104 = por %p102, %p103
      %p105 = scmp.ne.s32.totalorder %s94, %s95
      %p106 = scmp.eq.s32.totalorder %s18, 0
      %p107 = por %p105, %p106
      %p108 = scmp.ne.s32.totalorder %s94, %s95
      %p109 = scmp.eq.s32.totalorder %s19, 3
      %p110 = por %p108, %p109
      %p112 = scmp.ne.s32.totalorder %s95, %s111
      %p113 = scmp.eq.s32.totalorder %s19, 0
      %p114 = por %p112, %p113
      %p115 = scmp.le.s32.totalorder 1, %s13
      %p116 = scmp.lt.s32.totalorder %s13, 5
      %p117 = pnand %p115, %p116
      %p118 = pneg %p117
      // Predicated region
      $region9: #{ilql_forward_mixture.1} parent=5 // pred_check
        _
      $region10: #{ilql_forward_mixture.1} parent=5 // pred_check_branch
        %120 = sbr.rel (%p117) target = $region12
      $region11: #{ilql_forward_mixture.1} parent=5 // pred_region
        %s121 = ssub.s32 %s13, 1
        // Predicated region
        $region13: #{ilql_forward_mixture.1} parent=11 // pred_check
          %p122 = pneg %p34
        $region14: #{ilql_forward_mixture.1} parent=11 // pred_check_branch
          %124 = sbr.rel (%p122) target = $region16
        $region15: #{ilql_forward_mixture.1} parent=11 // pred_region
          %s126 = ssub.s32 16, 16
          %127 = vsyncadd [#allocation4], %s126
          %s129 = sshll.u32 %s0, 4
          %s130 = int_to_ptr.vmem [resolvable:$true] %s129
          %132 = dma.vmem_to_smem %s130, 16, [#allocation2], [#allocation4]
        $region16: #{ilql_forward_mixture.1} parent=11 // pred_fallthru
          _
        // Predicated region
        $region17: #{ilql_forward_mixture.1} parent=11 // pred_check
          %p133 = pneg %p55
        $region18: #{ilql_forward_mixture.1} parent=11 // pred_check_branch
          %135 = sbr.rel (%p133) target = $region20
        $region19: #{ilql_forward_mixture.1} parent=11 // pred_region
          _
        $region20: #{ilql_forward_mixture.1} parent=11 // pred_fallthru
          _
      $region12: #{ilql_forward_mixture.1} parent=5 // pred_fallthru
        _
      %p136 = scmp.lt.s32.totalorder %s13, 4
      // Predicated region
      $region21: #{ilql_forward_mixture.1} parent=5 // pred_check
        %p137 = pneg %p136
      $region22: #{ilql_forward_mixture.1} parent=5 // pred_check_branch
        %139 = sbr.rel (%p137) target = $region24
      $region23: #{ilql_forward_mixture.1} parent=5 // pred_region
        // Predicated region
        $region25: #{ilql_forward_mixture.1} parent=23 // pred_check
          %p140 = pneg %p75
        $region26: #{ilql_forward_mixture.1} parent=23 // pred_check_branch
          %142 = sbr.rel (%p140) target = $region28
        $region27: #{ilql_forward_mixture.1} parent=23 // pred_region
          %s143 = sand.u32 %s65, 1
          %s144 = scalar_lea.sflag [#allocation3], %s143
          %s145 = sand.u32 %s65, 1
          %s146 = smul.addr %s145, 256
          %s147 = scalar_lea.vmem [#allocation5], %s146
          %s148 = smul.u32 2, %s13
          %s150 = ssub.s32 4096, 4096
          %151 = vsyncadd %s144, %s150
          %s152 = smul.addr %s148, 64
          %s153 = scalar_lea.hbm %s2, %s152
          %s154 = sshll.u32 %s147, 4
          %s155 = int_to_ptr.vmem [resolvable:$true] %s154
          %160 = dma.hbm_to_vmem [thread:$0]  %s153, 4096, %s155, %s144, 512, 128, 8
        $region28: #{ilql_forward_mixture.1} parent=23 // pred_fallthru
          _
      $region24: #{ilql_forward_mixture.1} parent=5 // pred_fallthru
        _
      %p161 = scmp.le.s32.totalorder 1, %s13
      %p162 = scmp.lt.s32.totalorder %s13, 5
      %p163 = pnand %p161, %p162
      %p164 = pneg %p163
      // Predicated region
      $region29: #{ilql_forward_mixture.1} parent=5 // pred_check
        _
      $region30: #{ilql_forward_mixture.1} parent=5 // pred_check_branch
        %166 = sbr.rel (%p163) target = $region32
      $region31: #{ilql_forward_mixture.1} parent=5 // pred_region
        %s167 = ssub.s32 %s13, 1
        // Predicated region
        $region33: #{ilql_forward_mixture.1} parent=31 // pred_check
          %p168 = pneg %p34
        $region34: #{ilql_forward_mixture.1} parent=31 // pred_check_branch
          %170 = sbr.rel (%p168) target = $region36
        $region35: #{ilql_forward_mixture.1} parent=31 // pred_region
          %171 = dma.done [#allocation4], 16
        $region36: #{ilql_forward_mixture.1} parent=31 // pred_fallthru
          _
        %s172 = sand.u32 %s68, 1
        %s173 = scalar_lea.sflag [#allocation3], %s172
        %s174 = sand.u32 %s68, 1
        %s175 = smul.addr %s174, 256
        %s176 = scalar_lea.vmem [#allocation5], %s175
        // Predicated region
        $region37: #{ilql_forward_mixture.1} parent=31 // pred_check
          %p177 = pneg %p81
        $region38: #{ilql_forward_mixture.1} parent=31 // pred_check_branch
          %179 = sbr.rel (%p177) target = $region40
        $region39: #{ilql_forward_mixture.1} parent=31 // pred_region
          %180 = dma.done %s173, 4096
        $region40: #{ilql_forward_mixture.1} parent=31 // pred_fallthru
          _
        %181 = sfence
        %p182 = pneg %p34
        %p183 = pneg %p31
        %p184 = pneg %p55
        %p185 = pneg %p52
        %s186 = sand.u32 %s68, 1
        %s187 = scalar_lea.sflag [#allocation3], %s186
        %s188 = sand.u32 %s68, 1
        %s189 = smul.addr %s188, 256
        %s190 = scalar_lea.vmem [#allocation5], %s189
        %p191 = pneg %p81
        %p192 = pneg %p78
        %p193 = pneg %p107
        %p194 = pneg %p104
        %s195 = sand.u32 %s94, 1
        %s196 = sand.u32 %s94, 1
        %s197 = smul.addr %s196, 32
        %s198 = scalar_lea.vmem [#allocation6], %s197
        %s199 = smul.u32 2, %s18
        %s200 = smul.u32 2, %s18
        %s202 = sld [smem:[#allocation2]]
        %s203 = sld [smem:[#allocation2 + $0x1]]
        %v204 = vld [vmem:[%s1] sm:$0xf]
        %v205 = vld [vmem:[%s1 + $0x4] sm:$0xf]
        %v206 = vld [vmem:[%s176] sm:$0xff]
        %v207 = vld [vmem:[%s176 + $0x8] sm:$0xff]
        %v208 = vld [vmem:[%s176 + $0x10] sm:$0xff]
        %v209 = vld [vmem:[%s176 + $0x18] sm:$0xff]
        %v210 = vld [vmem:[%s176 + $0x20] sm:$0xff]
        %v211 = vld [vmem:[%s176 + $0x28] sm:$0xff]
        %v212 = vld [vmem:[%s176 + $0x30] sm:$0xff]
        %v213 = vld [vmem:[%s176 + $0x38] sm:$0xff]
        %v214 = vld [vmem:[%s176 + $0x40] sm:$0xff]
        %v215 = vld [vmem:[%s176 + $0x48] sm:$0xff]
        %v216 = vld [vmem:[%s176 + $0x50] sm:$0xff]
        %v217 = vld [vmem:[%s176 + $0x58] sm:$0xff]
        %v218 = vld [vmem:[%s176 + $0x60] sm:$0xff]
        %v219 = vld [vmem:[%s176 + $0x68] sm:$0xff]
        %v220 = vld [vmem:[%s176 + $0x70] sm:$0xff]
        %v221 = vld [vmem:[%s176 + $0x78] sm:$0xff]
        %s222 = scalar_lea.vmem %s176, 128 [#allocation5]
        %v223 = vld [vmem:[%s222] sm:$0xff]
        %v224 = vld [vmem:[%s222 + $0x8] sm:$0xff]
        %v225 = vld [vmem:[%s222 + $0x10] sm:$0xff]
        %v226 = vld [vmem:[%s222 + $0x18] sm:$0xff]
        %v227 = vld [vmem:[%s222 + $0x20] sm:$0xff]
        %v228 = vld [vmem:[%s222 + $0x28] sm:$0xff]
        %v229 = vld [vmem:[%s222 + $0x30] sm:$0xff]
        %v230 = vld [vmem:[%s222 + $0x38] sm:$0xff]
        %v231 = vld [vmem:[%s222 + $0x40] sm:$0xff]
        %v232 = vld [vmem:[%s222 + $0x48] sm:$0xff]
        %v233 = vld [vmem:[%s222 + $0x50] sm:$0xff]
        %v234 = vld [vmem:[%s222 + $0x58] sm:$0xff]
        %v235 = vld [vmem:[%s222 + $0x60] sm:$0xff]
        %v236 = vld [vmem:[%s222 + $0x68] sm:$0xff]
        %v237 = vld [vmem:[%s222 + $0x70] sm:$0xff]
        %v238 = vld [vmem:[%s222 + $0x78] sm:$0xff]
        %v239 = vstv %s203
        %v242 = vunpack.c.l.b16 %v204
        %v243 = vunpack.c.l.b16 %v205
        %v244 = vpack.c.b16 %v243, %v242
        %v262 = vunpack.c.l.b16 %v223
        %v263 = vunpack.c.h.b16 %v223
        %v264 = vunpack.c.l.b16 %v224
        %v265 = vunpack.c.h.b16 %v224
        %v266 = vunpack.c.l.b16 %v225
        %v267 = vunpack.c.h.b16 %v225
        %v268 = vunpack.c.l.b16 %v226
        %v269 = vunpack.c.h.b16 %v226
        %v270 = vunpack.c.l.b16 %v227
        %v271 = vunpack.c.h.b16 %v227
        %v272 = vunpack.c.l.b16 %v228
        %v273 = vunpack.c.h.b16 %v228
        %v274 = vunpack.c.l.b16 %v229
        %v275 = vunpack.c.h.b16 %v229
        %v276 = vunpack.c.l.b16 %v230
        %v277 = vunpack.c.h.b16 %v230
        %v278 = vunpack.c.l.b16 %v231
        %v279 = vunpack.c.h.b16 %v231
        %v280 = vunpack.c.l.b16 %v232
        %v281 = vunpack.c.h.b16 %v232
        %v282 = vunpack.c.l.b16 %v233
        %v283 = vunpack.c.h.b16 %v233
        %v284 = vunpack.c.l.b16 %v234
        %v285 = vunpack.c.h.b16 %v234
        %v286 = vunpack.c.l.b16 %v235
        %v287 = vunpack.c.h.b16 %v235
        %v288 = vunpack.c.l.b16 %v236
        %v289 = vunpack.c.h.b16 %v236
        %v290 = vunpack.c.l.b16 %v237
        %v291 = vunpack.c.h.b16 %v237
        %v292 = vunpack.c.l.b16 %v238
        %v293 = vunpack.c.h.b16 %v238
        %v294 = vpack.c.b16 %v264, %v262
        %v295 = vpack.c.b16 %v265, %v263
        %v296 = vpack.c.b16 %v268, %v266
        %v297 = vpack.c.b16 %v269, %v267
        %v298 = vpack.c.b16 %v272, %v270
        %v299 = vpack.c.b16 %v273, %v271
        %v300 = vpack.c.b16 %v276, %v274
        %v301 = vpack.c.b16 %v277, %v275
        %v302 = vpack.c.b16 %v280, %v278
        %v303 = vpack.c.b16 %v281, %v279
        %v304 = vpack.c.b16 %v284, %v282
        %v305 = vpack.c.b16 %v285, %v283
        %v306 = vpack.c.b16 %v288, %v286
        %v307 = vpack.c.b16 %v289, %v287
        %v308 = vpack.c.b16 %v292, %v290
        %v309 = vpack.c.b16 %v293, %v291
        %326 = vmatprep.subr.bf16.mxu0 %v295
        %327 = vmatpush1.bf16.msra.mxu0 %v294
        %328 = vmatprep.subr.bf16.mxu0 %v297
        %329 = vmatpush1.bf16.msra.mxu0 %v296
        %330 = vmatprep.subr.bf16.mxu0 %v299
        %331 = vmatpush1.bf16.msra.mxu0 %v298
        %332 = vmatprep.subr.bf16.mxu0 %v301
        %333 = vmatpush1.bf16.msra.mxu0 %v300
        %334 = vmatprep.subr.bf16.mxu0 %v303
        %335 = vmatpush1.bf16.msra.mxu0 %v302
        %336 = vmatprep.subr.bf16.mxu0 %v305
        %337 = vmatpush1.bf16.msra.mxu0 %v304
        %338 = vmatprep.subr.bf16.mxu0 %v307
        %339 = vmatpush1.bf16.msra.mxu0 %v306
        %340 = vmatprep.subr.bf16.mxu0 %v309
        %341 = vmatpush1.bf16.msra.mxu0 %v308
        %342 = vmatprep.subr.bf16.mxu0 0
        %343 = vmatpush1.bf16.msra.mxu0 0
        %344 = vmatprep.subr.bf16.mxu0 0
        %345 = vmatpush1.bf16.msra.mxu0 0
        %346 = vmatprep.subr.bf16.mxu0 0
        %347 = vmatpush1.bf16.msra.mxu0 0
        %348 = vmatprep.subr.bf16.mxu0 0
        %349 = vmatpush1.bf16.msra.mxu0 0
        %350 = vmatprep.subr.bf16.mxu0 0
        %351 = vmatpush1.bf16.msra.mxu0 0
        %352 = vmatprep.subr.bf16.mxu0 0
        %353 = vmatpush1.bf16.msra.mxu0 0
        %354 = vmatprep.subr.bf16.mxu0 0
        %355 = vmatpush1.bf16.msra.mxu0 0
        %356 = vmatprep.subr.bf16.mxu0 0
        %357 = vmatpush1.bf16.msra.mxu0 0
        %358 = vmatprep.mubr.bf16.mxu0 0
        %359 = vmatmul.mubr.bf16.gmra.mrb[0].mxu0 %v244
        %v360 = vpop.f32.mrb[0].mxu0
        %v361 = vadd.f32 %v239, %v360
        %v362 = vpop.f32.mrb[0].mxu0
        %v363 = vadd.f32 %v239, %v362
        %v364 = vpop.f32.mrb[0].mxu0
        %v365 = vadd.f32 %v239, %v364
        %v366 = vpop.f32.mrb[0].mxu0
        %v367 = vadd.f32 %v239, %v366
        %368 = vdwg.mxu0
        %v369 = vstv %s202
        %v370 = vmul.f32 %v369, %v361
        %v371 = vmul.f32 %v369, %v363
        %v372 = vmul.f32 %v369, %v365
        %v373 = vmul.f32 %v369, %v367
        %v390 = vunpack.c.l.b16 %v206
        %v391 = vunpack.c.h.b16 %v206
        %v392 = vunpack.c.l.b16 %v207
        %v393 = vunpack.c.h.b16 %v207
        %v394 = vunpack.c.l.b16 %v208
        %v395 = vunpack.c.h.b16 %v208
        %v396 = vunpack.c.l.b16 %v209
        %v397 = vunpack.c.h.b16 %v209
        %v398 = vunpack.c.l.b16 %v210
        %v399 = vunpack.c.h.b16 %v210
        %v400 = vunpack.c.l.b16 %v211
        %v401 = vunpack.c.h.b16 %v211
        %v402 = vunpack.c.l.b16 %v212
        %v403 = vunpack.c.h.b16 %v212
        %v404 = vunpack.c.l.b16 %v213
        %v405 = vunpack.c.h.b16 %v213
        %v406 = vunpack.c.l.b16 %v214
        %v407 = vunpack.c.h.b16 %v214
        %v408 = vunpack.c.l.b16 %v215
        %v409 = vunpack.c.h.b16 %v215
        %v410 = vunpack.c.l.b16 %v216
        %v411 = vunpack.c.h.b16 %v216
        %v412 = vunpack.c.l.b16 %v217
        %v413 = vunpack.c.h.b16 %v217
        %v414 = vunpack.c.l.b16 %v218
        %v415 = vunpack.c.h.b16 %v218
        %v416 = vunpack.c.l.b16 %v219
        %v417 = vunpack.c.h.b16 %v219
        %v418 = vunpack.c.l.b16 %v220
        %v419 = vunpack.c.h.b16 %v220
        %v420 = vunpack.c.l.b16 %v221
        %v421 = vunpack.c.h.b16 %v221
        %v422 = vpack.c.b16 %v392, %v390
        %v423 = vpack.c.b16 %v393, %v391
        %v424 = vpack.c.b16 %v396, %v394
        %v425 = vpack.c.b16 %v397, %v395
        %v426 = vpack.c.b16 %v400, %v398
        %v427 = vpack.c.b16 %v401, %v399
        %v428 = vpack.c.b16 %v404, %v402
        %v429 = vpack.c.b16 %v405, %v403
        %v430 = vpack.c.b16 %v408, %v406
        %v431 = vpack.c.b16 %v409, %v407
        %v432 = vpack.c.b16 %v412, %v410
        %v433 = vpack.c.b16 %v413, %v411
        %v434 = vpack.c.b16 %v416, %v414
        %v435 = vpack.c.b16 %v417, %v415
        %v436 = vpack.c.b16 %v420, %v418
        %v437 = vpack.c.b16 %v421, %v419
        %454 = vmatprep.subr.bf16.mxu0 %v423
        %455 = vmatpush1.bf16.msra.mxu0 %v422
        %456 = vmatprep.subr.bf16.mxu0 %v425
        %457 = vmatpush1.bf16.msra.mxu0 %v424
        %458 = vmatprep.subr.bf16.mxu0 %v427
        %459 = vmatpush1.bf16.msra.mxu0 %v426
        %460 = vmatprep.subr.bf16.mxu0 %v429
        %461 = vmatpush1.bf16.msra.mxu0 %v428
        %462 = vmatprep.subr.bf16.mxu0 %v431
        %463 = vmatpush1.bf16.msra.mxu0 %v430
        %464 = vmatprep.subr.bf16.mxu0 %v433
        %465 = vmatpush1.bf16.msra.mxu0 %v432
        %466 = vmatprep.subr.bf16.mxu0 %v435
        %467 = vmatpush1.bf16.msra.mxu0 %v434
        %468 = vmatprep.subr.bf16.mxu0 %v437
        %469 = vmatpush1.bf16.msra.mxu0 %v436
        %470 = vmatprep.subr.bf16.mxu0 0
        %471 = vmatpush1.bf16.msra.mxu0 0
        %472 = vmatprep.subr.bf16.mxu0 0
        %473 = vmatpush1.bf16.msra.mxu0 0
        %474 = vmatprep.subr.bf16.mxu0 0
        %475 = vmatpush1.bf16.msra.mxu0 0
        %476 = vmatprep.subr.bf16.mxu0 0
        %477 = vmatpush1.bf16.msra.mxu0 0
        %478 = vmatprep.subr.bf16.mxu0 0
        %479 = vmatpush1.bf16.msra.mxu0 0
        %480 = vmatprep.subr.bf16.mxu0 0
        %481 = vmatpush1.bf16.msra.mxu0 0
        %482 = vmatprep.subr.bf16.mxu0 0
        %483 = vmatpush1.bf16.msra.mxu0 0
        %484 = vmatprep.subr.bf16.mxu0 0
        %485 = vmatpush1.bf16.msra.mxu0 0
        %486 = vmatprep.mubr.bf16.mxu0 0
        %487 = vmatmul.mubr.bf16.gmra.mrb[0].mxu0 %v244
        %v488 = vpop.f32.mrb[0].mxu0
        %v489 = vadd.f32 %v370, %v488
        %v490 = vpop.f32.mrb[0].mxu0
        %v491 = vadd.f32 %v371, %v490
        %v492 = vpop.f32.mrb[0].mxu0
        %v493 = vadd.f32 %v372, %v492
        %v494 = vpop.f32.mrb[0].mxu0
        %v495 = vadd.f32 %v373, %v494
        %496 = vdwg.mxu0
        %497 = vst [vmem:[%s198] sm:$0xff] %v489
        %498 = vst [vmem:[%s198 + $0x8] sm:$0xff] %v491
        %499 = vst [vmem:[%s198 + $0x10] sm:$0xff] %v493
        %500 = vst [vmem:[%s198 + $0x18] sm:$0xff] %v495
        %s501 = sand.u32 %s94, 1
        %s502 = sand.u32 %s94, 1
        %s503 = smul.addr %s502, 32
        %s504 = scalar_lea.vmem [#allocation6], %s503
        // Predicated region
        $region41: #{ilql_forward_mixture.1} parent=31 // pred_check
          %p505 = pneg %p104
        $region42: #{ilql_forward_mixture.1} parent=31 // pred_check_branch
          %507 = sbr.rel (%p505) target = $region44
        $region43: #{ilql_forward_mixture.1} parent=31 // pred_region
          %s508 = smul.u32 2, %s18
          %s509 = smul.addr %s508, 8
          %s510 = scalar_lea.vmem %s3, %s509
          // Predicated region
          $region45: #{ilql_forward_mixture.1} parent=43 // pred_check
            _
          $region46: #{ilql_forward_mixture.1} parent=43 // pred_check_branch
            %512 = sbr.rel (0) target = $region48
          $region47: #{ilql_forward_mixture.1} parent=43 // pred_region
            // Predicated region
            $region49: #{ilql_forward_mixture.1} parent=47 // pred_check
              _
            $region50: #{ilql_forward_mixture.1} parent=47 // pred_check_branch
              %514 = sbr.rel (0) target = $region52
            $region51: #{ilql_forward_mixture.1} parent=47 // pred_region
              loop: start=0, step=1, limit=1
              $region53: #{ilql_forward_mixture.1} parent=51 // loop_pre_header
                _
              $region54: #{ilql_forward_mixture.1} parent=51 // loop_header
                %s516 = sphi 0, %s520
                %p517 = scmp.ge.s32.totalorder %s516, 1
                %s521 = sphi %s504, %s504
                %s522 = sphi %s510, %s510
              $region55: #{ilql_forward_mixture.1} parent=51 // loop_header_branch
                %519 = sbr.rel (%p517) target = $region59
              $region56: #{ilql_forward_mixture.1} parent=51 // loop_body
                %v523 = vld [vmem:[%s521] sm:$0xff]
                %524 = vst [vmem:[%s522] sm:$0xff] %v523
                %v525 = vld [vmem:[%s521 + $0x8] sm:$0xff]
                %526 = vst [vmem:[%s522 + $0x8] sm:$0xff] %v525
                %v527 = vld [vmem:[%s521 + $0x10] sm:$0xff]
                %528 = vst [vmem:[%s522 + $0x40] sm:$0xff] %v527
                %v529 = vld [vmem:[%s521 + $0x18] sm:$0xff]
                %530 = vst [vmem:[%s522 + $0x48] sm:$0xff] %v529
              $region57: #{ilql_forward_mixture.1} parent=51 // loop_footer
                %s520 = sadd.s32 1, %s516
              $region58: #{ilql_forward_mixture.1} parent=51 // loop_footer_branch
                %515 = sbr.rel target = $region54
              $region59: #{ilql_forward_mixture.1} parent=51 // loop_exit
                _
            $region52: #{ilql_forward_mixture.1} parent=47 // pred_fallthru
              _
            // Predicated region
            $region60: #{ilql_forward_mixture.1} parent=47 // pred_check
              _
            $region61: #{ilql_forward_mixture.1} parent=47 // pred_check_branch
              %532 = sbr.rel target = $region63
            $region62: #{ilql_forward_mixture.1} parent=47 // pred_region
              _
            $region63: #{ilql_forward_mixture.1} parent=47 // pred_fallthru
              _
          $region48: #{ilql_forward_mixture.1} parent=43 // pred_fallthru
            _
          %533 = vnop
        $region44: #{ilql_forward_mixture.1} parent=31 // pred_fallthru
          _
      $region32: #{ilql_forward_mixture.1} parent=5 // pred_fallthru
        _
      %p534 = scmp.le.s32.totalorder 2, %s13
      // Predicated region
      $region64: #{ilql_forward_mixture.1} parent=5 // pred_check
        %p535 = pneg %p534
      $region65: #{ilql_forward_mixture.1} parent=5 // pred_check_branch
        %537 = sbr.rel (%p535) target = $region67
      $region66: #{ilql_forward_mixture.1} parent=5 // pred_region
        %s538 = ssub.s32 %s13, 2
        // Predicated region
        $region68: #{ilql_forward_mixture.1} parent=66 // pred_check
          %p539 = pneg %p110
        $region69: #{ilql_forward_mixture.1} parent=66 // pred_check_branch
          %541 = sbr.rel (%p539) target = $region71
        $region70: #{ilql_forward_mixture.1} parent=66 // pred_region
          %s542 = sand.u32 %s95, 1
          %s543 = sand.u32 %s95, 1
          %s544 = smul.addr %s543, 32
          %s545 = scalar_lea.vmem [#allocation6], %s544
        $region71: #{ilql_forward_mixture.1} parent=66 // pred_fallthru
          _
      $region67: #{ilql_forward_mixture.1} parent=5 // pred_fallthru
        _
    $region6: #{ilql_forward_mixture.1} parent=1 // loop_footer
      %s17 = sadd.s32 1, %s13
    $region7: #{ilql_forward_mixture.1} parent=1 // loop_footer_branch
      %12 = sbr.rel target = $region3
    $region8: #{ilql_forward_mixture.1} parent=1 // loop_exit
      _
    %546 = vsyncpa [#allocation3], 1
    %s547 = scalar_lea.sflag [#allocation3], 1
    %548 = vsyncpa %s547, 1
    %549 = vsyncpa [#allocation4], 1
    %s550 = scalar_lea.sflag [#allocation4], 1
    %551 = vsyncpa %s550, 1

</llo_original>
